<compile_context>
chip_gen: v5e
topology: v5e:2x2
jax: 0.10.0
libtpu: 0.0.40
codegen_flags: <defaults>
</compile_context>

<pallas_src>
import jax
import jax.numpy as jnp
from jax import lax
from jax.experimental import pallas as pl
from jax.experimental.pallas import tpu as pltpu


def _gcb_kernel(x_ref, wk_ref, w1_ref, b1_ref, g_ref, bt_ref, w2_ref, b2_ref,
                o_ref):
    x = x_ref[...]                                   # (TB, C, HW)
    if x.dtype != jnp.float32:
        x = x.astype(jnp.float32)

    wk = wk_ref[...]                                 # (1, C, 1)
    w1 = w1_ref[...]                                 # (C, C_out)
    b1 = b1_ref[...]                                 # (1, C_out)
    gamma = g_ref[...]                               # (1, C_out)
    beta = bt_ref[...]                               # (1, C_out)
    w2 = w2_ref[...]                                 # (C_out, C)
    b2 = b2_ref[...]                                 # (1, C)

    # ---- Conv_key (1x1): channel dot per spatial position.  Kept on the
    # VPU/XLU (broadcast-mul + sublane reduce): the MXU has no reuse for this
    # degenerate vector-matrix product and the kernel is HBM-bound anyway.
    # Conv_key bias is omitted: a constant logit offset cancels in softmax.
    logits = jnp.sum(x * wk, axis=1, keepdims=True)           # (TB, 1, HW)

    # ---- softmax over spatial positions (max-stabilized, exact f32 division)
    m = jnp.max(logits, axis=-1, keepdims=True)                # (TB, 1, 1)
    e = jnp.exp(logits - m)                                    # (TB, 1, HW)
    denom = jnp.sum(e, axis=-1, keepdims=True)                 # (TB, 1, 1)
    key = e * (1.0 / denom)                                    # (TB, 1, HW)

    # ---- global context vector: ctx[b, c] = sum_s x[b, c, s] * key[b, s]
    ctx = jnp.sum(x * key, axis=-1)                            # (TB, C)

    # ---- Conv_value[0]: 1x1 conv C -> C_out (tiny; exact f32 on the VPU)
    v1 = jnp.sum(ctx[:, :, None] * w1[None, :, :], axis=1) + b1   # (TB, C_out)

    # ---- LayerNorm([C_out, 1, 1]): normalize across channels
    n_out = v1.shape[-1]
    mu = jnp.sum(v1, axis=-1, keepdims=True) * (1.0 / n_out)
    d = v1 - mu
    var = jnp.sum(d * d, axis=-1, keepdims=True) * (1.0 / n_out)
    v1n = d * lax.rsqrt(var + 1e-5) * gamma + beta

    # ---- ReLU
    h = jnp.maximum(v1n, 0.0)

    # ---- Conv_value[3]: 1x1 conv C_out -> C (tiny; exact f32 on the VPU)
    v2 = jnp.sum(h[:, :, None] * w2[None, :, :], axis=1) + b2     # (TB, C)

    # ---- residual add, broadcast over spatial; dense store of the block
    o_ref[...] = (x + v2[:, :, None]).astype(o_ref.dtype)


def _num_tensorcores():
    """Best-effort detection of dual-TensorCore parts (v7x); default 1."""
    try:
        kind = jax.devices()[0].device_kind
    except Exception:
        return 1
    return 2 if "v7" in str(kind).lower() else 1


def global_context_block(x, params):
    """x: (B, C, H, W). Returns (B, C, H, W), same dtype as x."""
    wk, bk, w1, b1, g, bt, w2, b2 = params
    del bk  # constant logit bias cancels exactly in the spatial softmax
    B, C, H, W = x.shape
    HW = H * W
    C_out = w1.shape[0]

    # Flatten spatial dims.  No padding / slicing / aliasing: the trailing
    # block dims equal the full array dims (exempt from the (8,128) rule), so
    # the kernel is the only HBM pass over x.
    x2 = x.reshape(B, C, HW)

    # Tiny parameter arrays reshaped once into kernel-friendly layouts.
    wk_k = wk.reshape(1, C, 1)                # Conv_key.weight
    w1_k = jnp.transpose(w1)                  # (C, C_out)   Conv_value[0].weight
    b1_k = b1.reshape(1, C_out)               # Conv_value[0].bias
    g_k = g.reshape(1, C_out)                 # LayerNorm.weight
    bt_k = bt.reshape(1, C_out)               # LayerNorm.bias
    w2_k = jnp.transpose(w2)                  # (C_out, C)   Conv_value[3].weight
    b2_k = b2.reshape(1, C)                   # Conv_value[3].bias

    itemsize = jnp.dtype(x.dtype).itemsize
    bytes_per_batch = C * HW * itemsize

    # HBM-bound kernel: target ~4 MiB per grid step (amortizes the ~0.35us
    # per-step overhead, ~85%+ of HBM roofline), while the double-buffered
    # in/out pipeline plus in-body temporaries (~6x block) stays well under
    # v7x's 64 MiB VMEM.
    target_block_bytes = 4 * 1024 * 1024
    tb = max(1, target_block_bytes // max(1, bytes_per_batch))
    tb = min(tb, B)
    # TODO(synk): if a single batch slab (C*HW*itemsize) is much larger than
    # the target block, split the spatial axis with an online softmax instead
    # of relying on tb=1.

    # Only dual-TensorCore parts (v7x) benefit from splitting the grid; on
    # v5e/v6e keep the full-size block (fewer, bigger DMAs).
    if _num_tensorcores() >= 2 and B >= 2:
        tb = min(tb, (B + 1) // 2)

    num_blocks = pl.cdiv(B, tb)
    block_bytes = tb * bytes_per_batch

    try:
        vmem_cap = int(pltpu.get_tpu_info().vmem_capacity_bytes)
    except Exception:
        vmem_cap = 64 * 2 ** 20  # conservative (v7x per-TensorCore)
    vmem_limit = int(min(vmem_cap * 3 // 4,
                         max(16 * 2 ** 20, 8 * block_bytes + 2 * 2 ** 20)))

    cost = pl.CostEstimate(
        flops=int(B * (5 * C * HW + 4 * C * C_out + 4 * HW + 10 * C_out)),
        transcendentals=int(B * (HW + 1)),
        bytes_accessed=int(2 * B * C * HW * itemsize),
    )

    out = pl.pallas_call(
        _gcb_kernel,
        out_shape=jax.ShapeDtypeStruct((B, C, HW), x.dtype),
        grid_spec=pltpu.PrefetchScalarGridSpec(
            num_scalar_prefetch=0,
            grid=(num_blocks,),
            in_specs=[
                pl.BlockSpec((tb, C, HW), lambda i: (i, 0, 0)),    # x
                pl.BlockSpec((1, C, 1), lambda i: (0, 0, 0)),      # Conv_key.weight
                pl.BlockSpec((C, C_out), lambda i: (0, 0)),        # Conv_value[0].weight^T
                pl.BlockSpec((1, C_out), lambda i: (0, 0)),        # Conv_value[0].bias
                pl.BlockSpec((1, C_out), lambda i: (0, 0)),        # LayerNorm.weight
                pl.BlockSpec((1, C_out), lambda i: (0, 0)),        # LayerNorm.bias
                pl.BlockSpec((C_out, C), lambda i: (0, 0)),        # Conv_value[3].weight^T
                pl.BlockSpec((1, C), lambda i: (0, 0)),            # Conv_value[3].bias
            ],
            out_specs=pl.BlockSpec((tb, C, HW), lambda i: (i, 0, 0)),
        ),
        cost_estimate=cost,
        compiler_params=pltpu.CompilerParams(
            dimension_semantics=("parallel",),
            vmem_limit_bytes=vmem_limit,
        ),
    )(x2, wk_k, w1_k, b1_k, g_k, bt_k, w2_k, b2_k)

    return out.reshape(B, C, H, W)


def reference(x, params):
    """Pure-JAX reference matching the PyTorch forward (f32-accurate)."""
    wk, bk, w1, b1, g, bt, w2, b2 = params
    B, C, H, W = x.shape
    hp = jax.lax.Precision.HIGHEST
    xf = x.reshape(B, C, H * W)
    logits = jnp.einsum('c,bcs->bs', wk[0], xf, precision=hp) + bk[0, 0]
    key = jax.nn.softmax(logits, axis=-1)
    ctx = jnp.einsum('bcs,bs->bc', xf, key, precision=hp)
    v1 = jnp.dot(ctx, w1.T, precision=hp) + b1[:, 0]
    mu = v1.mean(-1, keepdims=True)
    var = ((v1 - mu) ** 2).mean(-1, keepdims=True)
    v1n = (v1 - mu) / jnp.sqrt(var + 1e-5) * g[:, 0] + bt[:, 0]
    h = jnp.maximum(v1n, 0.0)
    v2 = jnp.dot(h, w2.T, precision=hp) + b2[:, 0]
    return x + v2[:, :, None, None]


if __name__ == "__main__":
    B, C, H, W = 2, 32, 16, 16
    scale = 16
    C_out = C // scale  # 2

    root = jax.random.PRNGKey(0)
    kx, k1, k2, k3, k4, k5, k6 = jax.random.split(root, 7)

    x = jax.random.normal(kx, (B, C, H, W), dtype=jnp.float32)

    # Deterministic synthetic parameters (shapes from the module's __init__).
    wk = 0.1 * jax.random.normal(k1, (1, C), dtype=jnp.float32)       # Conv_key.weight
    bk = 0.1 * jax.random.normal(k2, (1, 1), dtype=jnp.float32)       # Conv_key.bias
    w1 = 0.1 * jax.random.normal(k3, (C_out, C), dtype=jnp.float32)   # Conv_value[0].weight
    b1 = 0.1 * jax.random.normal(k4, (C_out, 1), dtype=jnp.float32)   # Conv_value[0].bias
    g = jnp.ones((C_out, 1), dtype=jnp.float32)                       # LayerNorm.weight
    bt = jnp.zeros((C_out, 1), dtype=jnp.float32)                     # LayerNorm.bias
    w2 = 0.1 * jax.random.normal(k5, (C, C_out), dtype=jnp.float32)   # Conv_value[3].weight
    b2 = 0.1 * jax.random.normal(k6, (C, 1), dtype=jnp.float32)       # Conv_value[3].bias

    params = (wk, bk, w1, b1, g, bt, w2, b2)

    out = global_context_block(x, params)
    out = jax.block_until_ready(out)

    ref = reference(x, params)
    assert out.shape == (B, C, H, W)
    assert jnp.allclose(out, ref, atol=2e-4, rtol=2e-4), "mismatch vs reference"

    print("KERNEL_OK")
</pallas_src>

<mosaic_0001>
module attributes {stable_mosaic.version = 11 : i64} {
  func.func @_gcb_kernel(%arg0: i32, %arg1: memref<2x32x256xf32, #tpu.memory_space<vmem>>, %arg2: memref<1x32x1xf32, #tpu.memory_space<vmem>>, %arg3: memref<32x2xf32, #tpu.memory_space<vmem>>, %arg4: memref<1x2xf32, #tpu.memory_space<vmem>>, %arg5: memref<1x2xf32, #tpu.memory_space<vmem>>, %arg6: memref<1x2xf32, #tpu.memory_space<vmem>>, %arg7: memref<2x32xf32, #tpu.memory_space<vmem>>, %arg8: memref<1x32xf32, #tpu.memory_space<vmem>>, %arg9: memref<2x32x256xf32, #tpu.memory_space<vmem>>) attributes {dimension_semantics = [#tpu.dimension_semantics<parallel>], iteration_bounds = array<i64: 1>, scalar_prefetch = 0 : i64, scratch_operands = 0 : i64, tpu.core_type = #tpu.core_type<tc>, window_params = [{transform_indices = @transform_0, window_bounds = array<i64: 2, 32, 256>}, {pipeline_mode = #tpu.pipeline_mode<synchronous>, transform_indices = @transform_1, window_bounds = array<i64: 1, 32, 1>}, {pipeline_mode = #tpu.pipeline_mode<synchronous>, transform_indices = @transform_2, window_bounds = array<i64: 32, 2>}, {pipeline_mode = #tpu.pipeline_mode<synchronous>, transform_indices = @transform_3, window_bounds = array<i64: 1, 2>}, {pipeline_mode = #tpu.pipeline_mode<synchronous>, transform_indices = @transform_4, window_bounds = array<i64: 1, 2>}, {pipeline_mode = #tpu.pipeline_mode<synchronous>, transform_indices = @transform_5, window_bounds = array<i64: 1, 2>}, {pipeline_mode = #tpu.pipeline_mode<synchronous>, transform_indices = @transform_6, window_bounds = array<i64: 2, 32>}, {pipeline_mode = #tpu.pipeline_mode<synchronous>, transform_indices = @transform_7, window_bounds = array<i64: 1, 32>}, {transform_indices = @transform_8, window_bounds = array<i64: 2, 32, 256>}]} {
    %c0 = arith.constant 0 : index
    %c0_0 = arith.constant 0 : index
    %c0_1 = arith.constant 0 : index
    %0 = vector.load %arg1[%c0, %c0_0, %c0_1] : memref<2x32x256xf32, #tpu.memory_space<vmem>>, vector<2x32x256xf32>
    %c0_2 = arith.constant 0 : index
    %c0_3 = arith.constant 0 : index
    %c0_4 = arith.constant 0 : index
    %1 = vector.load %arg2[%c0_2, %c0_3, %c0_4] : memref<1x32x1xf32, #tpu.memory_space<vmem>>, vector<1x32x1xf32>
    %c0_5 = arith.constant 0 : index
    %c0_6 = arith.constant 0 : index
    %2 = vector.load %arg3[%c0_5, %c0_6] : memref<32x2xf32, #tpu.memory_space<vmem>>, vector<32x2xf32>
    %c0_7 = arith.constant 0 : index
    %c0_8 = arith.constant 0 : index
    %3 = vector.load %arg4[%c0_7, %c0_8] : memref<1x2xf32, #tpu.memory_space<vmem>>, vector<1x2xf32>
    %c0_9 = arith.constant 0 : index
    %c0_10 = arith.constant 0 : index
    %4 = vector.load %arg5[%c0_9, %c0_10] : memref<1x2xf32, #tpu.memory_space<vmem>>, vector<1x2xf32>
    %c0_11 = arith.constant 0 : index
    %c0_12 = arith.constant 0 : index
    %5 = vector.load %arg6[%c0_11, %c0_12] : memref<1x2xf32, #tpu.memory_space<vmem>>, vector<1x2xf32>
    %c0_13 = arith.constant 0 : index
    %c0_14 = arith.constant 0 : index
    %6 = vector.load %arg7[%c0_13, %c0_14] : memref<2x32xf32, #tpu.memory_space<vmem>>, vector<2x32xf32>
    %c0_15 = arith.constant 0 : index
    %c0_16 = arith.constant 0 : index
    %7 = vector.load %arg8[%c0_15, %c0_16] : memref<1x32xf32, #tpu.memory_space<vmem>>, vector<1x32xf32>
    %8 = vector.broadcast %1 : vector<1x32x1xf32> to vector<2x32x256xf32>
    %9 = arith.mulf %0, %8 : vector<2x32x256xf32>
    %cst = arith.constant dense<0.000000e+00> : vector<2x256xf32>
    %10 = vector.multi_reduction <add>, %9, %cst [1] : vector<2x32x256xf32> to vector<2x256xf32>
    %11 = vector.shape_cast %10 : vector<2x256xf32> to vector<2x1x256xf32>
    %cst_17 = arith.constant dense<0xFF800000> : vector<2x1xf32>
    %12 = vector.multi_reduction <maximumf>, %11, %cst_17 [2] : vector<2x1x256xf32> to vector<2x1xf32>
    %13 = vector.shape_cast %12 : vector<2x1xf32> to vector<2x1x1xf32>
    %14 = vector.broadcast %13 : vector<2x1x1xf32> to vector<2x1x256xf32>
    %15 = arith.subf %11, %14 : vector<2x1x256xf32>
    %16 = math.exp %15 : vector<2x1x256xf32>
    %cst_18 = arith.constant dense<0.000000e+00> : vector<2x1xf32>
    %17 = vector.multi_reduction <add>, %16, %cst_18 [2] : vector<2x1x256xf32> to vector<2x1xf32>
    %18 = vector.shape_cast %17 : vector<2x1xf32> to vector<2x1x1xf32>
    %cst_19 = arith.constant 1.000000e+00 : f32
    %19 = vector.broadcast %cst_19 : f32 to vector<2x1x1xf32>
    %20 = arith.divf %19, %18 : vector<2x1x1xf32>
    %21 = vector.broadcast %20 : vector<2x1x1xf32> to vector<2x1x256xf32>
    %22 = arith.mulf %16, %21 : vector<2x1x256xf32>
    %23 = vector.broadcast %22 : vector<2x1x256xf32> to vector<2x32x256xf32>
    %24 = arith.mulf %0, %23 : vector<2x32x256xf32>
    %cst_20 = arith.constant dense<0.000000e+00> : vector<2x32xf32>
    %25 = vector.multi_reduction <add>, %24, %cst_20 [2] : vector<2x32x256xf32> to vector<2x32xf32>
    %26 = vector.shape_cast %25 : vector<2x32xf32> to vector<2x32x1xf32>
    %27 = vector.shape_cast %2 : vector<32x2xf32> to vector<1x32x2xf32>
    %28 = vector.broadcast %26 : vector<2x32x1xf32> to vector<2x32x2xf32>
    %29 = vector.broadcast %27 : vector<1x32x2xf32> to vector<2x32x2xf32>
    %30 = arith.mulf %28, %29 : vector<2x32x2xf32>
    %cst_21 = arith.constant dense<0.000000e+00> : vector<2x2xf32>
    %31 = vector.multi_reduction <add>, %30, %cst_21 [1] : vector<2x32x2xf32> to vector<2x2xf32>
    %32 = vector.broadcast %3 : vector<1x2xf32> to vector<2x2xf32>
    %33 = arith.addf %31, %32 : vector<2x2xf32>
    %cst_22 = arith.constant dense<0.000000e+00> : vector<2xf32>
    %34 = vector.multi_reduction <add>, %33, %cst_22 [1] : vector<2x2xf32> to vector<2xf32>
    %35 = vector.shape_cast %34 : vector<2xf32> to vector<2x1xf32>
    %cst_23 = arith.constant 5.000000e-01 : f32
    %36 = vector.broadcast %cst_23 : f32 to vector<2x1xf32>
    %37 = arith.mulf %35, %36 : vector<2x1xf32>
    %38 = vector.broadcast %37 : vector<2x1xf32> to vector<2x2xf32>
    %39 = arith.subf %33, %38 : vector<2x2xf32>
    %40 = arith.mulf %39, %39 : vector<2x2xf32>
    %cst_24 = arith.constant dense<0.000000e+00> : vector<2xf32>
    %41 = vector.multi_reduction <add>, %40, %cst_24 [1] : vector<2x2xf32> to vector<2xf32>
    %42 = vector.shape_cast %41 : vector<2xf32> to vector<2x1xf32>
    %cst_25 = arith.constant 5.000000e-01 : f32
    %43 = vector.broadcast %cst_25 : f32 to vector<2x1xf32>
    %44 = arith.mulf %42, %43 : vector<2x1xf32>
    %cst_26 = arith.constant 9.99999974E-6 : f32
    %45 = vector.broadcast %cst_26 : f32 to vector<2x1xf32>
    %46 = arith.addf %44, %45 : vector<2x1xf32>
    %47 = math.rsqrt %46 : vector<2x1xf32>
    %48 = vector.broadcast %47 : vector<2x1xf32> to vector<2x2xf32>
    %49 = arith.mulf %39, %48 : vector<2x2xf32>
    %50 = vector.broadcast %4 : vector<1x2xf32> to vector<2x2xf32>
    %51 = arith.mulf %49, %50 : vector<2x2xf32>
    %52 = vector.broadcast %5 : vector<1x2xf32> to vector<2x2xf32>
    %53 = arith.addf %51, %52 : vector<2x2xf32>
    %cst_27 = arith.constant 0.000000e+00 : f32
    %54 = vector.broadcast %cst_27 : f32 to vector<2x2xf32>
    %55 = arith.maximumf %53, %54 : vector<2x2xf32>
    %56 = vector.shape_cast %55 : vector<2x2xf32> to vector<2x2x1xf32>
    %57 = vector.shape_cast %6 : vector<2x32xf32> to vector<1x2x32xf32>
    %58 = vector.broadcast %56 : vector<2x2x1xf32> to vector<2x2x32xf32>
    %59 = vector.broadcast %57 : vector<1x2x32xf32> to vector<2x2x32xf32>
    %60 = arith.mulf %58, %59 : vector<2x2x32xf32>
    %cst_28 = arith.constant dense<0.000000e+00> : vector<2x32xf32>
    %61 = vector.multi_reduction <add>, %60, %cst_28 [1] : vector<2x2x32xf32> to vector<2x32xf32>
    %62 = vector.broadcast %7 : vector<1x32xf32> to vector<2x32xf32>
    %63 = arith.addf %61, %62 : vector<2x32xf32>
    %64 = vector.shape_cast %63 : vector<2x32xf32> to vector<2x32x1xf32>
    %65 = vector.broadcast %64 : vector<2x32x1xf32> to vector<2x32x256xf32>
    %66 = arith.addf %0, %65 : vector<2x32x256xf32>
    %c0_29 = arith.constant 0 : index
    %c0_30 = arith.constant 0 : index
    %c0_31 = arith.constant 0 : index
    %67 = vector.load %arg9[%c0_29, %c0_30, %c0_31] : memref<2x32x256xf32, #tpu.memory_space<vmem>>, vector<2x32x256xf32>
    tpu.vector_store %arg9[%c0_29, %c0_30, %c0_31], %66 {strides = array<i32>} : memref<2x32x256xf32, #tpu.memory_space<vmem>>, vector<2x32x256xf32>,
    return
  }
  func.func @transform_0(%arg0: i32) -> (i32, i32, i32) {
    %c0_i32 = arith.constant 0 : i32
    %c0_i32_0 = arith.constant 0 : i32
    %c0_i32_1 = arith.constant 0 : i32
    return %arg0, %c0_i32, %c0_i32_0 : i32, i32, i32
  }
  func.func @transform_1(%arg0: i32) -> (i32, i32, i32) {
    %c0_i32 = arith.constant 0 : i32
    %c0_i32_0 = arith.constant 0 : i32
    %c0_i32_1 = arith.constant 0 : i32
    %c0_i32_2 = arith.constant 0 : i32
    return %c0_i32, %c0_i32_0, %c0_i32_1 : i32, i32, i32
  }
  func.func @transform_2(%arg0: i32) -> (i32, i32) {
    %c0_i32 = arith.constant 0 : i32
    %c0_i32_0 = arith.constant 0 : i32
    %c0_i32_1 = arith.constant 0 : i32
    return %c0_i32, %c0_i32_0 : i32, i32
  }
  func.func @transform_3(%arg0: i32) -> (i32, i32) {
    %c0_i32 = arith.constant 0 : i32
    %c0_i32_0 = arith.constant 0 : i32
    %c0_i32_1 = arith.constant 0 : i32
    return %c0_i32, %c0_i32_0 : i32, i32
  }
  func.func @transform_4(%arg0: i32) -> (i32, i32) {
    %c0_i32 = arith.constant 0 : i32
    %c0_i32_0 = arith.constant 0 : i32
    %c0_i32_1 = arith.constant 0 : i32
    return %c0_i32, %c0_i32_0 : i32, i32
  }
  func.func @transform_5(%arg0: i32) -> (i32, i32) {
    %c0_i32 = arith.constant 0 : i32
    %c0_i32_0 = arith.constant 0 : i32
    %c0_i32_1 = arith.constant 0 : i32
    return %c0_i32, %c0_i32_0 : i32, i32
  }
  func.func @transform_6(%arg0: i32) -> (i32, i32) {
    %c0_i32 = arith.constant 0 : i32
    %c0_i32_0 = arith.constant 0 : i32
    %c0_i32_1 = arith.constant 0 : i32
    return %c0_i32, %c0_i32_0 : i32, i32
  }
  func.func @transform_7(%arg0: i32) -> (i32, i32) {
    %c0_i32 = arith.constant 0 : i32
    %c0_i32_0 = arith.constant 0 : i32
    %c0_i32_1 = arith.constant 0 : i32
    return %c0_i32, %c0_i32_0 : i32, i32
  }
  func.func @transform_8(%arg0: i32) -> (i32, i32, i32) {
    %c0_i32 = arith.constant 0 : i32
    %c0_i32_0 = arith.constant 0 : i32
    %c0_i32_1 = arith.constant 0 : i32
    return %arg0, %c0_i32, %c0_i32_0 : i32, i32, i32
  }
}

</mosaic_0001>

<llo_original>
// kernel: tpu_custom_call.1
$region0: #{tpu_custom_call.1}
  #allocation0 [shape = 'u32[]', space=smem, size = 0x4, offset = 0x4, fixed_abs, tag = 'smem constant byte address 0x4 - core index']
  #allocation1 [shape = 'u32[72,128]{1,0:T(1,128)}', space=vmem, size = 0x9000, scoped, tag = 'internal scratch']
  %s0 = inlined_call_operand.hbm [shape: f32[2,32,256], index: 0, kind: input, shape index: {}]
  %s1 = inlined_call_operand.vmem [shape: f32[1,32,1], index: 1, kind: input, shape index: {}]
  %s2 = inlined_call_operand.vmem [shape: f32[32,2], index: 2, kind: input, shape index: {}]
  %s3 = inlined_call_operand.vmem [shape: f32[1,2], index: 3, kind: input, shape index: {}]
  %s4 = inlined_call_operand.vmem [shape: f32[1,2], index: 4, kind: input, shape index: {}]
  %s5 = inlined_call_operand.vmem [shape: f32[1,2], index: 5, kind: input, shape index: {}]
  %s6 = inlined_call_operand.vmem [shape: f32[2,32], index: 6, kind: input, shape index: {}]
  %s7 = inlined_call_operand.vmem [shape: f32[1,32], index: 7, kind: input, shape index: {}]
  %s8 = inlined_call_operand.hbm [shape: f32[2,32,256], index: 8, kind: output, shape index: {}]
  %s9 = sld [smem:[#allocation0]]
  $region46: #{tpu_custom_call.1} parent=0
    _
  %s11 = ssub.s32 1, %s9
  %s12 = scalar_select 0, %s11, %s9
  $region1: #{tpu_custom_call.1} parent=0
    #allocation2 [shape = 'u8[65536]{0}', space=vmem, size = 0x10000, scoped, tag = 'input window, operand 0, single buffered']
    #allocation3 [shape = 's32[1]{0}', space=sflag, size = 0x4, scoped, tag = 'scoped memory for tpu_custom_call.1']
    #allocation4 [shape = 's32[1]{0}', space=sflag, size = 0x4, scoped, tag = 'scoped memory for tpu_custom_call.1']
    #allocation5 [shape = 'u8[65536]{0}', space=vmem, size = 0x10000, scoped, tag = 'output window, operand 0, single buffered']
    %13 = vsyncpa [#allocation3], 0
    %14 = vsyncpa [#allocation4], 0
    // Predicated region
    $region2: #{tpu_custom_call.1} parent=1 // pred_check
      _
    $region3: #{tpu_custom_call.1} parent=1 // pred_check_branch
      %16 = sbr.rel (0) target = $region5
    $region4: #{tpu_custom_call.1} parent=1 // pred_region
      %18 = vsyncadd [#allocation3], 0
      %s19 = sshll.u32 %s0, 4
      %s20 = int_to_ptr.hbm [resolvable:$true] %s19
      %s21 = sshll.u32 [#allocation2], 4
      %s22 = int_to_ptr.vmem [resolvable:$true] %s21
      %27 = dma.hbm_to_vmem [thread:$0]  %s20, 2048, %s22, [#allocation3], 256, 256, 16
    $region5: #{tpu_custom_call.1} parent=1 // pred_fallthru
      _
    // Predicated region
    $region6: #{tpu_custom_call.1} parent=1 // pred_check
      _
    $region7: #{tpu_custom_call.1} parent=1 // pred_check_branch
      %29 = sbr.rel (0) target = $region9
    $region8: #{tpu_custom_call.1} parent=1 // pred_region
      _
    $region9: #{tpu_custom_call.1} parent=1 // pred_fallthru
      _
    // Predicated region
    $region10: #{tpu_custom_call.1} parent=1 // pred_check
      _
    $region11: #{tpu_custom_call.1} parent=1 // pred_check_branch
      %31 = sbr.rel (0) target = $region13
    $region12: #{tpu_custom_call.1} parent=1 // pred_region
      _
    $region13: #{tpu_custom_call.1} parent=1 // pred_fallthru
      _
    // Predicated region
    $region14: #{tpu_custom_call.1} parent=1 // pred_check
      _
    $region15: #{tpu_custom_call.1} parent=1 // pred_check_branch
      %33 = sbr.rel (0) target = $region17
    $region16: #{tpu_custom_call.1} parent=1 // pred_region
      _
    $region17: #{tpu_custom_call.1} parent=1 // pred_fallthru
      _
    // Predicated region
    $region18: #{tpu_custom_call.1} parent=1 // pred_check
      _
    $region19: #{tpu_custom_call.1} parent=1 // pred_check_branch
      %35 = sbr.rel (0) target = $region21
    $region20: #{tpu_custom_call.1} parent=1 // pred_region
      _
    $region21: #{tpu_custom_call.1} parent=1 // pred_fallthru
      _
    // Predicated region
    $region22: #{tpu_custom_call.1} parent=1 // pred_check
      _
    $region23: #{tpu_custom_call.1} parent=1 // pred_check_branch
      %37 = sbr.rel (0) target = $region25
    $region24: #{tpu_custom_call.1} parent=1 // pred_region
      _
    $region25: #{tpu_custom_call.1} parent=1 // pred_fallthru
      _
    // Predicated region
    $region26: #{tpu_custom_call.1} parent=1 // pred_check
      _
    $region27: #{tpu_custom_call.1} parent=1 // pred_check_branch
      %39 = sbr.rel (0) target = $region29
    $region28: #{tpu_custom_call.1} parent=1 // pred_region
      _
    $region29: #{tpu_custom_call.1} parent=1 // pred_fallthru
      _
    // Predicated region
    $region30: #{tpu_custom_call.1} parent=1 // pred_check
      _
    $region31: #{tpu_custom_call.1} parent=1 // pred_check_branch
      %41 = sbr.rel (0) target = $region33
    $region32: #{tpu_custom_call.1} parent=1 // pred_region
      _
    $region33: #{tpu_custom_call.1} parent=1 // pred_fallthru
      _
    // Predicated region
    $region34: #{tpu_custom_call.1} parent=1 // pred_check
      _
    $region35: #{tpu_custom_call.1} parent=1 // pred_check_branch
      %43 = sbr.rel (0) target = $region37
    $region36: #{tpu_custom_call.1} parent=1 // pred_region
      %45 = dma.done [#allocation3], 2048
    $region37: #{tpu_custom_call.1} parent=1 // pred_fallthru
      _
    %v46 = vld [vmem:[#allocation2] sm:$0xff]
    %v47 = vld [vmem:[#allocation2 + $0x8] sm:$0xff]
    %v48 = vld [vmem:[#allocation2 + $0x10] sm:$0xff]
    %v49 = vld [vmem:[#allocation2 + $0x18] sm:$0xff]
    %v50 = vld [vmem:[#allocation2 + $0x20] sm:$0xff]
    %v51 = vld [vmem:[#allocation2 + $0x28] sm:$0xff]
    %v52 = vld [vmem:[#allocation2 + $0x30] sm:$0xff]
    %v53 = vld [vmem:[#allocation2 + $0x38] sm:$0xff]
    %v54 = vld [vmem:[#allocation2 + $0x40] sm:$0xff]
    %v55 = vld [vmem:[#allocation2 + $0x48] sm:$0xff]
    %v56 = vld [vmem:[#allocation2 + $0x50] sm:$0xff]
    %v57 = vld [vmem:[#allocation2 + $0x58] sm:$0xff]
    %v58 = vld [vmem:[#allocation2 + $0x60] sm:$0xff]
    %v59 = vld [vmem:[#allocation2 + $0x68] sm:$0xff]
    %v60 = vld [vmem:[#allocation2 + $0x70] sm:$0xff]
    %v61 = vld [vmem:[#allocation2 + $0x78] sm:$0xff]
    %v62 = vld [vmem:[%s1] sm:$0xff]
    %v63 = vld [vmem:[%s1 + $0x8] sm:$0xff]
    %v64 = vld [vmem:[%s1 + $0x10] sm:$0xff]
    %v65 = vld [vmem:[%s1 + $0x18] sm:$0xff]
    %v66 = vld [vmem:[%s2] sm:$0xff]
    %v67 = vld [vmem:[%s2 + $0x8] sm:$0xff]
    %v68 = vld [vmem:[%s2 + $0x10] sm:$0xff]
    %v69 = vld [vmem:[%s2 + $0x18] sm:$0xff]
    %v70 = vld [vmem:[%s3] sm:$0x1]
    %v71 = vld [vmem:[%s4] sm:$0x1]
    %v72 = vld [vmem:[%s5] sm:$0x1]
    %v73 = vld [vmem:[%s6] sm:$0x3]
    %v74 = vld [vmem:[%s7] sm:$0x1]
    %76 = vset.pattern.permute.xlu0 0
    %77 = vperm.xlu0 %76, %v62
    %v78 = vpop.permute.xlu0 %77
    %81 = vset.pattern.permute.xlu0 0
    %82 = vperm.xlu0 %81, %v63
    %v83 = vpop.permute.xlu0 %82
    %86 = vset.pattern.permute.xlu0 0
    %87 = vperm.xlu0 %86, %v64
    %v88 = vpop.permute.xlu0 %87
    %91 = vset.pattern.permute.xlu0 0
    %92 = vperm.xlu0 %91, %v65
    %v93 = vpop.permute.xlu0 %92
    %v95 = vmul.f32 %v46, %v78
    %v96 = vmul.f32 %v47, %v78
    %v97 = vmul.f32 %v48, %v83
    %v98 = vmul.f32 %v49, %v83
    %v99 = vmul.f32 %v50, %v88
    %v100 = vmul.f32 %v51, %v88
    %v101 = vmul.f32 %v52, %v93
    %v102 = vmul.f32 %v53, %v93
    %v103 = vmul.f32 %v54, %v78
    %v104 = vmul.f32 %v55, %v78
    %v105 = vmul.f32 %v56, %v83
    %v106 = vmul.f32 %v57, %v83
    %v107 = vmul.f32 %v58, %v88
    %v108 = vmul.f32 %v59, %v88
    %v109 = vmul.f32 %v60, %v93
    %v110 = vmul.f32 %v61, %v93
    %v111 = vadd.f32 %v95, %v97
    %v112 = vadd.f32 %v111, %v99
    %v113 = vadd.f32 %v112, %v101
    %v114 = vrot.slane %v113, 4
    %v115 = vadd.f32 %v113, %v114
    %v116 = vrot.slane %v115, 2
    %v117 = vadd.f32 %v115, %v116
    %v118 = vrot.slane %v117, 1
    %v119 = vadd.f32 %v117, %v118
    %v120 = vadd.f32 %v96, %v98
    %v121 = vadd.f32 %v120, %v100
    %v122 = vadd.f32 %v121, %v102
    %v123 = vrot.slane %v122, 4
    %v124 = vadd.f32 %v122, %v123
    %v125 = vrot.slane %v124, 2
    %v126 = vadd.f32 %v124, %v125
    %v127 = vrot.slane %v126, 1
    %v128 = vadd.f32 %v126, %v127
    %v129 = vadd.f32 %v103, %v105
    %v130 = vadd.f32 %v129, %v107
    %v131 = vadd.f32 %v130, %v109
    %v132 = vrot.slane %v131, 4
    %v133 = vadd.f32 %v131, %v132
    %v134 = vrot.slane %v133, 2
    %v135 = vadd.f32 %v133, %v134
    %v136 = vrot.slane %v135, 1
    %v137 = vadd.f32 %v135, %v136
    %v138 = vadd.f32 %v104, %v106
    %v139 = vadd.f32 %v138, %v108
    %v140 = vadd.f32 %v139, %v110
    %v141 = vrot.slane %v140, 4
    %v142 = vadd.f32 %v140, %v141
    %v143 = vrot.slane %v142, 2
    %v144 = vadd.f32 %v142, %v143
    %v145 = vrot.slane %v144, 1
    %v146 = vadd.f32 %v144, %v145
    %v147 = vmax.f32 %v119, %v128
    %148 = vmax.xlane.f32.xlu0 %v147
    %v149 = vpop.xlane.xlu0 %148
    %v150 = vmax.f32 %v137, %v146
    %151 = vmax.xlane.f32.xlu0 %v150
    %v152 = vpop.xlane.xlu0 %151
    %v153 = vsub.f32 %v119, %v149
    %v154 = vsub.f32 %v128, %v149
    %v155 = vsub.f32 %v137, %v152
    %v156 = vsub.f32 %v146, %v152
    %v157 = vmul.f32 %v153, 1.442695
    %v158 = vpow.pop %v157
    %v159 = vmul.f32 %v154, 1.442695
    %v160 = vpow.pop %v159
    %v161 = vmul.f32 %v155, 1.442695
    %v162 = vpow.pop %v161
    %v163 = vmul.f32 %v156, 1.442695
    %v164 = vpow.pop %v163
    %v165 = vadd.f32 %v158, %v160
    %166 = vadd.xlane.f32.xlu0 %v165
    %v167 = vpop.xlane.xlu0 %166
    %v168 = vadd.f32 %v162, %v164
    %169 = vadd.xlane.f32.xlu0 %v168
    %v170 = vpop.xlane.xlu0 %169
    %v171 = vrcp.pop %v167
    %v172 = vmul.f32 %v167, %v171
    %v173 = vsub.f32 1.0, %v172
    %v174 = vmul.f32 %v171, %v173
    %v175 = vadd.f32 %v171, %v174
    %vm176 = vweird.f32 %v167
    %vm177 = vweird.f32 %v171
    %vm178 = vmor %vm176, %vm177
    %v179 = vsel %vm178, %v171, %v175
    %v180 = vand.u32 2147483647, %v167
    %vm181 = vcmp.eq.f32.partialorder %v180, 8.507059e+37
    %v182 = vand.u32 %v167, 2147483648
    %v183 = vor.u32 1.1754944e-38, %v182
    %v184 = vsel %vm181, %v183, %v179
    %v185 = vmul.f32 1.0, %v184
    %v186 = vrcp.pop %v170
    %v187 = vmul.f32 %v170, %v186
    %v188 = vsub.f32 1.0, %v187
    %v189 = vmul.f32 %v186, %v188
    %v190 = vadd.f32 %v186, %v189
    %vm191 = vweird.f32 %v170
    %vm192 = vweird.f32 %v186
    %vm193 = vmor %vm191, %vm192
    %v194 = vsel %vm193, %v186, %v190
    %v195 = vand.u32 2147483647, %v170
    %vm196 = vcmp.eq.f32.partialorder %v195, 8.507059e+37
    %v197 = vand.u32 %v170, 2147483648
    %v198 = vor.u32 1.1754944e-38, %v197
    %v199 = vsel %vm196, %v198, %v194
    %v200 = vmul.f32 1.0, %v199
    %v201 = vmul.f32 %v158, %v185
    %v202 = vmul.f32 %v160, %v185
    %v203 = vmul.f32 %v162, %v200
    %v204 = vmul.f32 %v164, %v200
    %v205 = vmul.f32 %v46, %v201
    %v206 = vmul.f32 %v47, %v202
    %v207 = vmul.f32 %v48, %v201
    %v208 = vmul.f32 %v49, %v202
    %v209 = vmul.f32 %v50, %v201
    %v210 = vmul.f32 %v51, %v202
    %v211 = vmul.f32 %v52, %v201
    %v212 = vmul.f32 %v53, %v202
    %v213 = vmul.f32 %v54, %v203
    %v214 = vmul.f32 %v55, %v204
    %v215 = vmul.f32 %v56, %v203
    %v216 = vmul.f32 %v57, %v204
    %v217 = vmul.f32 %v58, %v203
    %v218 = vmul.f32 %v59, %v204
    %v219 = vmul.f32 %v60, %v203
    %v220 = vmul.f32 %v61, %v204
    %v221 = vadd.f32 %v205, %v206
    %222 = vadd.xlane.f32.xlu0 %v221
    %v223 = vpop.xlane.xlu0 %222
    %v224 = vadd.f32 %v207, %v208
    %225 = vadd.xlane.f32.xlu0 %v224
    %v226 = vpop.xlane.xlu0 %225
    %v227 = vadd.f32 %v209, %v210
    %228 = vadd.xlane.f32.xlu0 %v227
    %v229 = vpop.xlane.xlu0 %228
    %v230 = vadd.f32 %v211, %v212
    %231 = vadd.xlane.f32.xlu0 %v230
    %v232 = vpop.xlane.xlu0 %231
    %v233 = vadd.f32 %v213, %v214
    %234 = vadd.xlane.f32.xlu0 %v233
    %v235 = vpop.xlane.xlu0 %234
    %v236 = vadd.f32 %v215, %v216
    %237 = vadd.xlane.f32.xlu0 %v236
    %v238 = vpop.xlane.xlu0 %237
    %v239 = vadd.f32 %v217, %v218
    %240 = vadd.xlane.f32.xlu0 %v239
    %v241 = vpop.xlane.xlu0 %240
    %v242 = vadd.f32 %v219, %v220
    %243 = vadd.xlane.f32.xlu0 %v242
    %v244 = vpop.xlane.xlu0 %243
    %v245 = vmul.f32 %v223, %v66
    %v246 = vmul.f32 %v226, %v67
    %v247 = vmul.f32 %v229, %v68
    %v248 = vmul.f32 %v232, %v69
    %v249 = vmul.f32 %v235, %v66
    %v250 = vmul.f32 %v238, %v67
    %v251 = vmul.f32 %v241, %v68
    %v252 = vmul.f32 %v244, %v69
    %vm253 = vcmask 15360
    %v254 = vsel %vm253, %v245, 0.0
    %v255 = vsel %vm253, %v246, 0.0
    %v256 = vadd.f32 %v254, %v255
    %v257 = vsel %vm253, %v247, 0.0
    %v258 = vadd.f32 %v256, %v257
    %v259 = vsel %vm253, %v248, 0.0
    %v260 = vadd.f32 %v258, %v259
    %v261 = vrot.slane %v260, 4
    %v262 = vadd.f32 %v260, %v261
    %v263 = vrot.slane %v262, 2
    %v264 = vadd.f32 %v262, %v263
    %v265 = vrot.slane %v264, 1
    %v266 = vadd.f32 %v264, %v265
    %v267 = vsel %vm253, %v249, 0.0
    %v268 = vsel %vm253, %v250, 0.0
    %v269 = vadd.f32 %v267, %v268
    %v270 = vsel %vm253, %v251, 0.0
    %v271 = vadd.f32 %v269, %v270
    %v272 = vsel %vm253, %v252, 0.0
    %v273 = vadd.f32 %v271, %v272
    %v274 = vrot.slane %v273, 4
    %v275 = vadd.f32 %v273, %v274
    %v276 = vrot.slane %v275, 2
    %v277 = vadd.f32 %v275, %v276
    %v278 = vrot.slane %v277, 1
    %v279 = vadd.f32 %v277, %v278
    %v281 = vperm.slane %v70, 0
    %v283 = vadd.f32 %v266, %v281
    %v284 = vadd.f32 %v279, %v281
    %v287 = vrot.slane %v284, 7
    %vm288 = vcmask 1041409
    %v289 = vsel %vm288, %v287, %v283
    %vm291 = vcmask 9216
    %v292 = vsel %vm291, %v289, 0.0
    %293 = vadd.xlane.f32.xlu0 %v292
    %v294 = vpop.xlane.xlu0 %293
    %v295 = vmul.f32 %v294, 0.5
    %v297 = vrot.slane %v295, 1
    %v300 = vsub.f32 %v283, %v295
    %v301 = vsub.f32 %v284, %v297
    %v302 = vmul.f32 %v300, %v300
    %v303 = vmul.f32 %v301, %v301
    %v306 = vrot.slane %v303, 7
    %v307 = vsel %vm288, %v306, %v302
    %v309 = vsel %vm291, %v307, 0.0
    %310 = vadd.xlane.f32.xlu0 %v309
    %v311 = vpop.xlane.xlu0 %310
    %v312 = vmul.f32 %v311, 0.5
    %v313 = vadd.f32 %v312, 1e-05
    %v314 = vrsqrt.pop %v313
    %v315 = vmul.f32 %v314, %v313
    %v316 = vmul.f32 %v315, %v314
    %v317 = vmul.f32 0.5, %v316
    %v318 = vsub.f32 1.5, %v317
    %v319 = vmul.f32 %v314, %v318
    %vm320 = vweird.f32 %v313
    %vm321 = vweird.f32 %v314
    %vm322 = vmor %vm320, %vm321
    %v323 = vsel %vm322, %v314, %v319
    %v325 = vrot.slane %v323, 1
    %v328 = vmul.f32 %v300, %v323
    %v329 = vmul.f32 %v301, %v325
    %v331 = vperm.slane %v71, 0
    %v333 = vmul.f32 %v328, %v331
    %v334 = vmul.f32 %v329, %v331
    %v336 = vperm.slane %v72, 0
    %v338 = vadd.f32 %v333, %v336
    %v339 = vadd.f32 %v334, %v336
    %v340 = vmax.f32 %v338, 0.0
    %v341 = vmax.f32 %v339, 0.0
    %v342 = vperm.slane %v340, 0
    %v343 = vlaneseq
    %v344 = vshrl.u32 %v343, 7
    %346 = vset.pattern.permute.xlu0 %v344
    %347 = vperm.xlu0 %346, %v342
    %v348 = vpop.permute.xlu0 %347
    %v349 = vperm.slane %v341, 0
    %v350 = vlaneseq
    %v351 = vshrl.u32 %v350, 7
    %353 = vset.pattern.permute.xlu0 %v351
    %354 = vperm.xlu0 %353, %v349
    %v355 = vpop.permute.xlu0 %354
    %v356 = vmul.f32 %v348, %v73
    %v357 = vmul.f32 %v355, %v73
    %vm358 = vcmask 254976
    %v359 = vsel %vm358, %v356, 0.0
    %v360 = vrot.slane %v359, 4
    %v361 = vadd.f32 %v359, %v360
    %v362 = vrot.slane %v361, 2
    %v363 = vadd.f32 %v361, %v362
    %v364 = vrot.slane %v363, 1
    %v365 = vadd.f32 %v363, %v364
    %v366 = vsel %vm358, %v357, 0.0
    %v367 = vrot.slane %v366, 4
    %v368 = vadd.f32 %v366, %v367
    %v369 = vrot.slane %v368, 2
    %v370 = vadd.f32 %v368, %v369
    %v371 = vrot.slane %v370, 1
    %v372 = vadd.f32 %v370, %v371
    %v374 = vperm.slane %v74, 0
    %v376 = vadd.f32 %v365, %v374
    %v377 = vadd.f32 %v372, %v374
    %v378 = vperm.slane %v376, 0
    %v379 = vlaneseq
    %v380 = vshrl.u32 %v379, 7
    %382 = vset.pattern.permute.xlu0 %v380
    %383 = vperm.xlu0 %382, %v378
    %v384 = vpop.permute.xlu0 %383
    %v385 = vlaneseq
    %v386 = vshrl.u32 %v385, 7
    %v387 = vadd.s32 %v386, 8
    %388 = vset.pattern.permute.xlu0 %v387
    %389 = vperm.xlu0 %388, %v378
    %v390 = vpop.permute.xlu0 %389
    %v391 = vlaneseq
    %v392 = vshrl.u32 %v391, 7
    %v393 = vadd.s32 %v392, 16
    %394 = vset.pattern.permute.xlu0 %v393
    %395 = vperm.xlu0 %394, %v378
    %v396 = vpop.permute.xlu0 %395
    %v397 = vlaneseq
    %v398 = vshrl.u32 %v397, 7
    %v399 = vadd.s32 %v398, 24
    %400 = vset.pattern.permute.xlu0 %v399
    %401 = vperm.xlu0 %400, %v378
    %v402 = vpop.permute.xlu0 %401
    %v403 = vperm.slane %v377, 0
    %v404 = vlaneseq
    %v405 = vshrl.u32 %v404, 7
    %407 = vset.pattern.permute.xlu0 %v405
    %408 = vperm.xlu0 %407, %v403
    %v409 = vpop.permute.xlu0 %408
    %v410 = vlaneseq
    %v411 = vshrl.u32 %v410, 7
    %v412 = vadd.s32 %v411, 8
    %413 = vset.pattern.permute.xlu0 %v412
    %414 = vperm.xlu0 %413, %v403
    %v415 = vpop.permute.xlu0 %414
    %v416 = vlaneseq
    %v417 = vshrl.u32 %v416, 7
    %v418 = vadd.s32 %v417, 16
    %419 = vset.pattern.permute.xlu0 %v418
    %420 = vperm.xlu0 %419, %v403
    %v421 = vpop.permute.xlu0 %420
    %v422 = vlaneseq
    %v423 = vshrl.u32 %v422, 7
    %v424 = vadd.s32 %v423, 24
    %425 = vset.pattern.permute.xlu0 %v424
    %426 = vperm.xlu0 %425, %v403
    %v427 = vpop.permute.xlu0 %426
    %v428 = vadd.f32 %v46, %v384
    %v429 = vadd.f32 %v47, %v384
    %v430 = vadd.f32 %v48, %v390
    %v431 = vadd.f32 %v49, %v390
    %v432 = vadd.f32 %v50, %v396
    %v433 = vadd.f32 %v51, %v396
    %v434 = vadd.f32 %v52, %v402
    %v435 = vadd.f32 %v53, %v402
    %v436 = vadd.f32 %v54, %v409
    %v437 = vadd.f32 %v55, %v409
    %v438 = vadd.f32 %v56, %v415
    %v439 = vadd.f32 %v57, %v415
    %v440 = vadd.f32 %v58, %v421
    %v441 = vadd.f32 %v59, %v421
    %v442 = vadd.f32 %v60, %v427
    %v443 = vadd.f32 %v61, %v427
    %444 = vst [vmem:[#allocation5] sm:$0xff] %v428
    %445 = vst [vmem:[#allocation5 + $0x8] sm:$0xff] %v429
    %446 = vst [vmem:[#allocation5 + $0x10] sm:$0xff] %v430
    %447 = vst [vmem:[#allocation5 + $0x18] sm:$0xff] %v431
    %448 = vst [vmem:[#allocation5 + $0x20] sm:$0xff] %v432
    %449 = vst [vmem:[#allocation5 + $0x28] sm:$0xff] %v433
    %450 = vst [vmem:[#allocation5 + $0x30] sm:$0xff] %v434
    %451 = vst [vmem:[#allocation5 + $0x38] sm:$0xff] %v435
    %452 = vst [vmem:[#allocation5 + $0x40] sm:$0xff] %v436
    %453 = vst [vmem:[#allocation5 + $0x48] sm:$0xff] %v437
    %454 = vst [vmem:[#allocation5 + $0x50] sm:$0xff] %v438
    %455 = vst [vmem:[#allocation5 + $0x58] sm:$0xff] %v439
    %456 = vst [vmem:[#allocation5 + $0x60] sm:$0xff] %v440
    %457 = vst [vmem:[#allocation5 + $0x68] sm:$0xff] %v441
    %458 = vst [vmem:[#allocation5 + $0x70] sm:$0xff] %v442
    %459 = vst [vmem:[#allocation5 + $0x78] sm:$0xff] %v443
    // Predicated region
    $region38: #{tpu_custom_call.1} parent=1 // pred_check
      _
    $region39: #{tpu_custom_call.1} parent=1 // pred_check_branch
      %461 = sbr.rel (0) target = $region41
    $region40: #{tpu_custom_call.1} parent=1 // pred_region
      %463 = vsyncadd [#allocation4], 0
      %s464 = sshll.u32 [#allocation5], 4
      %s465 = int_to_ptr.vmem [resolvable:$true] %s464
      %s466 = sshll.u32 %s8, 4
      %s467 = int_to_ptr.hbm [resolvable:$true] %s466
      %472 = dma.vmem_to_hbm [thread:$0]  %s465, 2048, %s467, [#allocation4], 256, 256, 16
    $region41: #{tpu_custom_call.1} parent=1 // pred_fallthru
      _
    // Predicated region
    $region42: #{tpu_custom_call.1} parent=1 // pred_check
      _
    $region43: #{tpu_custom_call.1} parent=1 // pred_check_branch
      %474 = sbr.rel (0) target = $region45
    $region44: #{tpu_custom_call.1} parent=1 // pred_region
      %476 = dma.done [#allocation4], 2048
    $region45: #{tpu_custom_call.1} parent=1 // pred_fallthru
      _
    %477 = vsyncpa [#allocation3], 1
    %478 = vsyncpa [#allocation4], 1

</llo_original>
